<compile_context>
chip_gen: v5e
topology: v5e:2x2
jax: 0.10.0
libtpu: 0.0.40
codegen_flags: <defaults>
</compile_context>

<pallas_src>
import jax
import jax.numpy as jnp
from jax.experimental import pallas as pl
from jax.experimental.pallas import tpu as pltpu


def _make_divisible(v, divisor, min_value=None):
    if min_value is None:
        min_value = divisor
    new_v = max(min_value, int(v + divisor / 2) // divisor * divisor)
    if new_v < 0.9 * v:
        new_v += divisor
    return new_v


# ---------------------------------------------------------------------------
# Kernel 1: global average pool + squeeze/excite FC + h_sigmoid
# ---------------------------------------------------------------------------
def _se_reduce_kernel(x_ref, w1t_ref, b1_ref, w2t_ref, b2_ref,
                      scale_ref, pooled_ref):
    b = pl.program_id(0)
    # x_ref block is (1, C, HW): mean over the spatial (lane) axis.
    xb = x_ref[0].astype(jnp.float32)                              # (C, HW)
    pooled_ref[pl.ds(b, 1), :] = jnp.mean(xb, axis=-1)[None, :]    # row b

    @pl.when(b == pl.num_programs(0) - 1)
    def _():
        y = pooled_ref[...]                                        # (B, C) f32
        h = jnp.dot(y, w1t_ref[...].astype(jnp.float32),
                    preferred_element_type=jnp.float32,
                    precision=jax.lax.Precision.HIGHEST)
        h = jnp.maximum(h + b1_ref[...].astype(jnp.float32), 0.0)  # ReLU
        z = jnp.dot(h, w2t_ref[...].astype(jnp.float32),
                    preferred_element_type=jnp.float32,
                    precision=jax.lax.Precision.HIGHEST)
        z = z + b2_ref[...].astype(jnp.float32)
        # h_sigmoid: relu6(z + 3) / 6
        scale_ref[...] = (jnp.clip(z + 3.0, 0.0, 6.0) * (1.0 / 6.0)
                          ).astype(scale_ref.dtype)


# ---------------------------------------------------------------------------
# Kernel 2: out[b, c, :, :] = x[b, c, :, :] * scale[b, c]
# ---------------------------------------------------------------------------
def _se_scale_kernel(x_ref, s_ref, o_ref):
    o_ref[...] = (x_ref[...] * s_ref[...].astype(x_ref.dtype)).astype(o_ref.dtype)


def se_layer(x, w1, b1, w2, b2, *, block_bytes=2 * 1024 * 1024):
    """SELayer forward. x: (B, C, H, W); w1: (hidden, C); w2: (C, hidden)."""
    B, C, H, W = x.shape
    HW = H * W
    hidden = w1.shape[0]

    # ---- pass 1: pool + FC + h_sigmoid -> scale (B, C) -----------------
    x3 = x.reshape(B, C, HW)                    # free view, HW on lanes
    scale = pl.pallas_call(
        _se_reduce_kernel,
        out_shape=jax.ShapeDtypeStruct((B, C), jnp.float32),
        grid_spec=pltpu.PrefetchScalarGridSpec(
            num_scalar_prefetch=0,
            grid=(B,),
            in_specs=[
                pl.BlockSpec((1, C, HW), lambda b: (b, 0, 0)),
                pl.BlockSpec((C, hidden), lambda b: (0, 0)),     # W1^T
                pl.BlockSpec((1, hidden), lambda b: (0, 0)),     # b1
                pl.BlockSpec((hidden, C), lambda b: (0, 0)),     # W2^T
                pl.BlockSpec((1, C), lambda b: (0, 0)),          # b2
            ],
            out_specs=pl.BlockSpec((B, C), lambda b: (0, 0)),
            scratch_shapes=[pltpu.VMEM((B, C), jnp.float32)],
        ),
        compiler_params=pltpu.CompilerParams(
            dimension_semantics=("arbitrary",)),   # sequential accumulation
    )(x3, w1.T, b1.reshape(1, hidden), w2.T, b2.reshape(1, C))

    # ---- pass 2: elementwise rescale ------------------------------------
    rows = B * C
    x2 = x.reshape(rows, HW)                    # free view
    s2 = scale.reshape(rows, 1)                 # free view

    bytes_per_row = HW * x.dtype.itemsize
    if rows * bytes_per_row <= block_bytes:
        row_tile = rows                         # single block == full dim
    else:
        row_tile = max(8, (block_bytes // bytes_per_row) // 8 * 8)
        row_tile = min(row_tile, rows)

    out2 = pl.pallas_call(
        _se_scale_kernel,
        out_shape=jax.ShapeDtypeStruct((rows, HW), x.dtype),
        grid_spec=pltpu.PrefetchScalarGridSpec(
            num_scalar_prefetch=0,
            grid=(pl.cdiv(rows, row_tile),),
            in_specs=[
                pl.BlockSpec((row_tile, HW), lambda i: (i, 0)),
                pl.BlockSpec((row_tile, 1), lambda i: (i, 0)),
            ],
            out_specs=pl.BlockSpec((row_tile, HW), lambda i: (i, 0)),
        ),
        compiler_params=pltpu.CompilerParams(
            dimension_semantics=("parallel",)),
    )(x2, s2)

    return out2.reshape(B, C, H, W)


def _reference(x, w1, b1, w2, b2):
    y = jnp.mean(x, axis=(2, 3))                     # (B, C)
    y = jnp.maximum(y @ w1.T + b1, 0.0)
    y = y @ w2.T + b2
    y = jnp.clip(y + 3.0, 0.0, 6.0) / 6.0            # h_sigmoid
    return x * y[:, :, None, None]


if __name__ == "__main__":
    key = jax.random.PRNGKey(0)
    k1, k2, k3, k4, k5 = jax.random.split(key, 5)

    B, C, H, W = 2, 4, 16, 16
    reduction = 4
    hidden = _make_divisible(C // reduction, 8)      # -> 8

    x = jax.random.normal(k1, (B, C, H, W), dtype=jnp.float32)
    w1 = jax.random.normal(k2, (hidden, C), dtype=jnp.float32) * 0.5
    b1 = jax.random.normal(k3, (hidden,), dtype=jnp.float32) * 0.1
    w2 = jax.random.normal(k4, (C, hidden), dtype=jnp.float32) * 0.5
    b2 = jax.random.normal(k5, (C,), dtype=jnp.float32) * 0.1

    y = se_layer(x, w1, b1, w2, b2)
    y = jax.block_until_ready(y)

    y_ref = _reference(x, w1, b1, w2, b2)
    assert y.shape == x.shape and y.dtype == x.dtype
    err = float(jnp.max(jnp.abs(y - y_ref)))
    assert jnp.allclose(y, y_ref, atol=2e-3, rtol=2e-3), f"mismatch, max err {err}"

    print("KERNEL_OK")
</pallas_src>

<mosaic_0001>
module attributes {stable_mosaic.version = 11 : i64} {
  func.func @_se_reduce_kernel(%arg0: i32, %arg1: memref<1x4x256xf32, #tpu.memory_space<vmem>>, %arg2: memref<4x8xf32, #tpu.memory_space<vmem>>, %arg3: memref<1x8xf32, #tpu.memory_space<vmem>>, %arg4: memref<8x4xf32, #tpu.memory_space<vmem>>, %arg5: memref<1x4xf32, #tpu.memory_space<vmem>>, %arg6: memref<2x4xf32, #tpu.memory_space<vmem>>, %arg7: memref<2x4xf32, #tpu.memory_space<vmem>>) attributes {dimension_semantics = [#tpu.dimension_semantics<arbitrary>], iteration_bounds = array<i64: 2>, scalar_prefetch = 0 : i64, scratch_operands = 1 : i64, tpu.core_type = #tpu.core_type<tc>, window_params = [{transform_indices = @transform_0, window_bounds = array<i64: 1, 4, 256>}, {pipeline_mode = #tpu.pipeline_mode<synchronous>, transform_indices = @transform_1, window_bounds = array<i64: 4, 8>}, {pipeline_mode = #tpu.pipeline_mode<synchronous>, transform_indices = @transform_2, window_bounds = array<i64: 1, 8>}, {pipeline_mode = #tpu.pipeline_mode<synchronous>, transform_indices = @transform_3, window_bounds = array<i64: 8, 4>}, {pipeline_mode = #tpu.pipeline_mode<synchronous>, transform_indices = @transform_4, window_bounds = array<i64: 1, 4>}, {pipeline_mode = #tpu.pipeline_mode<synchronous>, transform_indices = @transform_5, window_bounds = array<i64: 2, 4>}]} {
    %c0 = arith.constant 0 : index
    %c0_0 = arith.constant 0 : index
    %c0_1 = arith.constant 0 : index
    %0 = vector.load %arg1[%c0, %c0_0, %c0_1] : memref<1x4x256xf32, #tpu.memory_space<vmem>>, vector<1x4x256xf32>
    %1 = vector.shape_cast %0 : vector<1x4x256xf32> to vector<4x256xf32>
    %cst = arith.constant dense<0.000000e+00> : vector<4xf32>
    %2 = vector.multi_reduction <add>, %1, %cst [1] : vector<4x256xf32> to vector<4xf32>
    %cst_2 = arith.constant 2.560000e+02 : f32
    %3 = vector.broadcast %cst_2 : f32 to vector<4xf32>
    %4 = arith.divf %2, %3 : vector<4xf32>
    %5 = vector.shape_cast %4 : vector<4xf32> to vector<1x4xf32>
    %6 = arith.index_cast %arg0 : i32 to index
    %c0_3 = arith.constant 0 : index
    %7 = vector.load %arg7[%6, %c0_3] : memref<2x4xf32, #tpu.memory_space<vmem>>, vector<1x4xf32>
    tpu.vector_store %arg7[%6, %c0_3], %5 {strides = array<i32>} : memref<2x4xf32, #tpu.memory_space<vmem>>, vector<1x4xf32>,
    %c1_i32 = arith.constant 1 : i32
    %8 = arith.cmpi eq, %arg0, %c1_i32 : i32
    %9 = arith.extui %8 : i1 to i32
    %c0_i32 = arith.constant 0 : i32
    %10 = arith.cmpi ne, %9, %c0_i32 : i32
    scf.if %10 {
      %c0_4 = arith.constant 0 : index
      %c0_5 = arith.constant 0 : index
      %11 = vector.load %arg7[%c0_4, %c0_5] : memref<2x4xf32, #tpu.memory_space<vmem>>, vector<2x4xf32>
      %c0_6 = arith.constant 0 : index
      %c0_7 = arith.constant 0 : index
      %12 = vector.load %arg2[%c0_6, %c0_7] : memref<4x8xf32, #tpu.memory_space<vmem>>, vector<4x8xf32>
      %cst_8 = arith.constant dense<0.000000e+00> : vector<2x8xf32>
      %13 = tpu.matmul %11, %12, %cst_8 {dimension_numbers = #tpu.dot_dimension_numbers<[1], [0], [0], [1], [0, 0, 1, 1], [], []>, precision = #tpu.contract_precision<fp32>} : vector<2x4xf32>, vector<4x8xf32>, vector<2x8xf32> -> vector<2x8xf32>
      %c0_9 = arith.constant 0 : index
      %c0_10 = arith.constant 0 : index
      %14 = vector.load %arg3[%c0_9, %c0_10] : memref<1x8xf32, #tpu.memory_space<vmem>>, vector<1x8xf32>
      %15 = vector.broadcast %14 : vector<1x8xf32> to vector<2x8xf32>
      %16 = arith.addf %13, %15 : vector<2x8xf32>
      %cst_11 = arith.constant 0.000000e+00 : f32
      %17 = vector.broadcast %cst_11 : f32 to vector<2x8xf32>
      %18 = arith.maximumf %16, %17 : vector<2x8xf32>
      %c0_12 = arith.constant 0 : index
      %c0_13 = arith.constant 0 : index
      %19 = vector.load %arg4[%c0_12, %c0_13] : memref<8x4xf32, #tpu.memory_space<vmem>>, vector<8x4xf32>
      %cst_14 = arith.constant dense<0.000000e+00> : vector<2x4xf32>
      %20 = tpu.matmul %18, %19, %cst_14 {dimension_numbers = #tpu.dot_dimension_numbers<[1], [0], [0], [1], [0, 0, 1, 1], [], []>, precision = #tpu.contract_precision<fp32>} : vector<2x8xf32>, vector<8x4xf32>, vector<2x4xf32> -> vector<2x4xf32>
      %c0_15 = arith.constant 0 : index
      %c0_16 = arith.constant 0 : index
      %21 = vector.load %arg5[%c0_15, %c0_16] : memref<1x4xf32, #tpu.memory_space<vmem>>, vector<1x4xf32>
      %22 = vector.broadcast %21 : vector<1x4xf32> to vector<2x4xf32>
      %23 = arith.addf %20, %22 : vector<2x4xf32>
      %cst_17 = arith.constant 3.000000e+00 : f32
      %24 = vector.broadcast %cst_17 : f32 to vector<2x4xf32>
      %25 = arith.addf %23, %24 : vector<2x4xf32>
      %cst_18 = arith.constant 0.000000e+00 : f32
      %cst_19 = arith.constant 6.000000e+00 : f32
      %26 = vector.broadcast %cst_18 : f32 to vector<2x4xf32>
      %27 = arith.maximumf %26, %25 : vector<2x4xf32>
      %28 = vector.broadcast %cst_19 : f32 to vector<2x4xf32>
      %29 = arith.minimumf %28, %27 : vector<2x4xf32>
      %cst_20 = arith.constant 0.166666672 : f32
      %30 = vector.broadcast %cst_20 : f32 to vector<2x4xf32>
      %31 = arith.mulf %29, %30 : vector<2x4xf32>
      %c0_21 = arith.constant 0 : index
      %c0_22 = arith.constant 0 : index
      %32 = vector.load %arg6[%c0_21, %c0_22] : memref<2x4xf32, #tpu.memory_space<vmem>>, vector<2x4xf32>
      tpu.vector_store %arg6[%c0_21, %c0_22], %31 {strides = array<i32>} : memref<2x4xf32, #tpu.memory_space<vmem>>, vector<2x4xf32>,
    } else {
    }
    return
  }
  func.func @transform_0(%arg0: i32) -> (i32, i32, i32) {
    %c0_i32 = arith.constant 0 : i32
    %c0_i32_0 = arith.constant 0 : i32
    %c0_i32_1 = arith.constant 0 : i32
    return %arg0, %c0_i32, %c0_i32_0 : i32, i32, i32
  }
  func.func @transform_1(%arg0: i32) -> (i32, i32) {
    %c0_i32 = arith.constant 0 : i32
    %c0_i32_0 = arith.constant 0 : i32
    %c0_i32_1 = arith.constant 0 : i32
    return %c0_i32, %c0_i32_0 : i32, i32
  }
  func.func @transform_2(%arg0: i32) -> (i32, i32) {
    %c0_i32 = arith.constant 0 : i32
    %c0_i32_0 = arith.constant 0 : i32
    %c0_i32_1 = arith.constant 0 : i32
    return %c0_i32, %c0_i32_0 : i32, i32
  }
  func.func @transform_3(%arg0: i32) -> (i32, i32) {
    %c0_i32 = arith.constant 0 : i32
    %c0_i32_0 = arith.constant 0 : i32
    %c0_i32_1 = arith.constant 0 : i32
    return %c0_i32, %c0_i32_0 : i32, i32
  }
  func.func @transform_4(%arg0: i32) -> (i32, i32) {
    %c0_i32 = arith.constant 0 : i32
    %c0_i32_0 = arith.constant 0 : i32
    %c0_i32_1 = arith.constant 0 : i32
    return %c0_i32, %c0_i32_0 : i32, i32
  }
  func.func @transform_5(%arg0: i32) -> (i32, i32) {
    %c0_i32 = arith.constant 0 : i32
    %c0_i32_0 = arith.constant 0 : i32
    %c0_i32_1 = arith.constant 0 : i32
    return %c0_i32, %c0_i32_0 : i32, i32
  }
}

</mosaic_0001>

<llo_original>
// kernel: tpu_custom_call.1
$region0: #{tpu_custom_call.1}
  #allocation0 [shape = 'u32[]', space=smem, size = 0x4, offset = 0x4, fixed_abs, tag = 'smem constant byte address 0x4 - core index']
  #allocation1 [shape = 'u32[72,128]{1,0:T(1,128)}', space=vmem, size = 0x9000, scoped, tag = 'internal scratch']
  #allocation2 [shape = 'f32[2,4]{1,0:T(2,128)}', space=vmem, size = 0x400, scoped, tag = 'scratch operand']
  %s0 = inlined_call_operand.hbm [shape: f32[2,4,256], index: 0, kind: input, shape index: {}]
  %s1 = inlined_call_operand.vmem [shape: f32[4,8], index: 1, kind: input, shape index: {}]
  %s2 = inlined_call_operand.vmem [shape: f32[1,8], index: 2, kind: input, shape index: {}]
  %s3 = inlined_call_operand.vmem [shape: f32[8,4], index: 3, kind: input, shape index: {}]
  %s4 = inlined_call_operand.vmem [shape: f32[1,4], index: 4, kind: input, shape index: {}]
  %s5 = inlined_call_operand.hbm [shape: f32[2,4], index: 5, kind: output, shape index: {}]
  %s6 = sld [smem:[#allocation0]]
  $region61: #{tpu_custom_call.1} parent=0
    _
  %s8 = ssub.s32 1, %s6
  %s9 = scalar_select 0, %s8, %s6
  $region1: #{tpu_custom_call.1} parent=0
    #allocation3 [shape = 'u8[8192]{0}', space=vmem, size = 0x2000, scoped, tag = 'input window, operand 0']
    #allocation4 [shape = 's32[2]{0}', space=sflag, size = 0x8, scoped, tag = 'scoped memory for tpu_custom_call.1']
    #allocation5 [shape = 's32[2]{0}', space=sflag, size = 0x8, scoped, tag = 'scoped memory for tpu_custom_call.1']
    #allocation6 [shape = 'u8[1024]{0}', space=vmem, size = 0x400, scoped, tag = 'output window, operand 0, single buffered']
    %10 = vsyncpa [#allocation4], 0
    %s11 = scalar_lea.sflag [#allocation4], 1
    %12 = vsyncpa %s11, 0
    %13 = vsyncpa [#allocation5], 0
    loop: start=0, step=1, limit=4
    $region2: #{tpu_custom_call.1} parent=1 // loop_pre_header
      _
    $region3: #{tpu_custom_call.1} parent=1 // loop_header
      %s15 = sphi 0, %s19
      %p16 = scmp.ge.s32.totalorder %s15, 4
      %s25 = sphi 0, %s27
      %s28 = sphi 0, %s25
      %s29 = sphi 0, %s28
      %s45 = sphi 0, %s29
      %s49 = sphi 0, %s49
      %s51 = sphi 0, %s49
      %s52 = sphi 0, %s51
      %s66 = sphi 0, %s52
      %s70 = sphi 0, %s70
      %s72 = sphi 0, %s70
      %s73 = sphi 0, %s72
      %s87 = sphi 0, %s73
      %s91 = sphi 0, %s91
      %s93 = sphi 0, %s91
      %s94 = sphi 0, %s93
      %s108 = sphi 0, %s94
      %s112 = sphi 0, %s112
      %s114 = sphi 0, %s112
      %s115 = sphi 0, %s114
      %s129 = sphi 0, %s115
      %s133 = sphi 0, %s133
      %s135 = sphi 0, %s133
      %s136 = sphi 0, %s135
      %s150 = sphi 0, %s136
    $region4: #{tpu_custom_call.1} parent=1 // loop_header_branch
      %18 = sbr.rel (%p16) target = $region8
    $region5: #{tpu_custom_call.1} parent=1 // loop_body
      %s20 = ssub.s32 %s15, 1
      %s21 = ssub.s32 %s15, 2
      %s22 = sadd.s32 %s15, 1
      %s23 = ssub.s32 %s15, %s22
      %p24 = scmp.eq.s32.totalorder %s23, 0
      %s26 = sadd.s32 %s25, 1
      %s27 = scalar_select %p24, %s25, %s26
      %p30 = pneg %p24
      %p31 = scmp.eq.s32.totalorder %s15, 1
      %p32 = por %p30, %p31
      %p33 = scmp.ne.s32.totalorder %s25, %s28
      %p34 = scmp.eq.s32.totalorder %s15, 0
      %p35 = por %p33, %p34
      %p36 = scmp.ne.s32.totalorder %s25, %s28
      %p37 = scmp.eq.s32.totalorder %s20, 1
      %p38 = por %p36, %p37
      %p39 = scmp.ne.s32.totalorder %s28, %s29
      %p40 = scmp.eq.s32.totalorder %s20, 0
      %p41 = por %p39, %p40
      %p42 = scmp.ne.s32.totalorder %s28, %s29
      %p43 = scmp.eq.s32.totalorder %s21, 1
      %p44 = por %p42, %p43
      %p46 = scmp.ne.s32.totalorder %s29, %s45
      %p47 = scmp.eq.s32.totalorder %s21, 0
      %p48 = por %p46, %p47
      %s50 = sadd.s32 %s49, 1
      %p53 = scmp.eq.s32.totalorder %s15, 1
      %p54 = scmp.ne.s32.totalorder %s49, %s51
      %p55 = scmp.eq.s32.totalorder %s15, 0
      %p56 = por %p54, %p55
      %p57 = scmp.ne.s32.totalorder %s49, %s51
      %p58 = scmp.eq.s32.totalorder %s20, 1
      %p59 = por %p57, %p58
      %p60 = scmp.ne.s32.totalorder %s51, %s52
      %p61 = scmp.eq.s32.totalorder %s20, 0
      %p62 = por %p60, %p61
      %p63 = scmp.ne.s32.totalorder %s51, %s52
      %p64 = scmp.eq.s32.totalorder %s21, 1
      %p65 = por %p63, %p64
      %p67 = scmp.ne.s32.totalorder %s52, %s66
      %p68 = scmp.eq.s32.totalorder %s21, 0
      %p69 = por %p67, %p68
      %s71 = sadd.s32 %s70, 1
      %p74 = scmp.eq.s32.totalorder %s15, 1
      %p75 = scmp.ne.s32.totalorder %s70, %s72
      %p76 = scmp.eq.s32.totalorder %s15, 0
      %p77 = por %p75, %p76
      %p78 = scmp.ne.s32.totalorder %s70, %s72
      %p79 = scmp.eq.s32.totalorder %s20, 1
      %p80 = por %p78, %p79
      %p81 = scmp.ne.s32.totalorder %s72, %s73
      %p82 = scmp.eq.s32.totalorder %s20, 0
      %p83 = por %p81, %p82
      %p84 = scmp.ne.s32.totalorder %s72, %s73
      %p85 = scmp.eq.s32.totalorder %s21, 1
      %p86 = por %p84, %p85
      %p88 = scmp.ne.s32.totalorder %s73, %s87
      %p89 = scmp.eq.s32.totalorder %s21, 0
      %p90 = por %p88, %p89
      %s92 = sadd.s32 %s91, 1
      %p95 = scmp.eq.s32.totalorder %s15, 1
      %p96 = scmp.ne.s32.totalorder %s91, %s93
      %p97 = scmp.eq.s32.totalorder %s15, 0
      %p98 = por %p96, %p97
      %p99 = scmp.ne.s32.totalorder %s91, %s93
      %p100 = scmp.eq.s32.totalorder %s20, 1
      %p101 = por %p99, %p100
      %p102 = scmp.ne.s32.totalorder %s93, %s94
      %p103 = scmp.eq.s32.totalorder %s20, 0
      %p104 = por %p102, %p103
      %p105 = scmp.ne.s32.totalorder %s93, %s94
      %p106 = scmp.eq.s32.totalorder %s21, 1
      %p107 = por %p105, %p106
      %p109 = scmp.ne.s32.totalorder %s94, %s108
      %p110 = scmp.eq.s32.totalorder %s21, 0
      %p111 = por %p109, %p110
      %s113 = sadd.s32 %s112, 1
      %p116 = scmp.eq.s32.totalorder %s15, 1
      %p117 = scmp.ne.s32.totalorder %s112, %s114
      %p118 = scmp.eq.s32.totalorder %s15, 0
      %p119 = por %p117, %p118
      %p120 = scmp.ne.s32.totalorder %s112, %s114
      %p121 = scmp.eq.s32.totalorder %s20, 1
      %p122 = por %p120, %p121
      %p123 = scmp.ne.s32.totalorder %s114, %s115
      %p124 = scmp.eq.s32.totalorder %s20, 0
      %p125 = por %p123, %p124
      %p126 = scmp.ne.s32.totalorder %s114, %s115
      %p127 = scmp.eq.s32.totalorder %s21, 1
      %p128 = por %p126, %p127
      %p130 = scmp.ne.s32.totalorder %s115, %s129
      %p131 = scmp.eq.s32.totalorder %s21, 0
      %p132 = por %p130, %p131
      %s134 = sadd.s32 %s133, 1
      %p137 = scmp.eq.s32.totalorder %s15, 1
      %p138 = scmp.ne.s32.totalorder %s133, %s135
      %p139 = scmp.eq.s32.totalorder %s15, 0
      %p140 = por %p138, %p139
      %p141 = scmp.ne.s32.totalorder %s133, %s135
      %p142 = scmp.eq.s32.totalorder %s20, 1
      %p143 = por %p141, %p142
      %p144 = scmp.ne.s32.totalorder %s135, %s136
      %p145 = scmp.eq.s32.totalorder %s20, 0
      %p146 = por %p144, %p145
      %p147 = scmp.ne.s32.totalorder %s135, %s136
      %p148 = scmp.eq.s32.totalorder %s21, 1
      %p149 = por %p147, %p148
      %p151 = scmp.ne.s32.totalorder %s136, %s150
      %p152 = scmp.eq.s32.totalorder %s21, 0
      %p153 = por %p151, %p152
      %p154 = scmp.le.s32.totalorder 1, %s15
      %p155 = scmp.lt.s32.totalorder %s15, 3
      %p156 = pnand %p154, %p155
      %p157 = pneg %p156
      // Predicated region
      $region9: #{tpu_custom_call.1} parent=5 // pred_check
        _
      $region10: #{tpu_custom_call.1} parent=5 // pred_check_branch
        %159 = sbr.rel (%p156) target = $region12
      $region11: #{tpu_custom_call.1} parent=5 // pred_region
        %s160 = ssub.s32 %s15, 1
        // Predicated region
        $region13: #{tpu_custom_call.1} parent=11 // pred_check
          %p161 = pneg %p62
        $region14: #{tpu_custom_call.1} parent=11 // pred_check_branch
          %163 = sbr.rel (%p161) target = $region16
        $region15: #{tpu_custom_call.1} parent=11 // pred_region
          _
        $region16: #{tpu_custom_call.1} parent=11 // pred_fallthru
          _
        // Predicated region
        $region17: #{tpu_custom_call.1} parent=11 // pred_check
          %p164 = pneg %p83
        $region18: #{tpu_custom_call.1} parent=11 // pred_check_branch
          %166 = sbr.rel (%p164) target = $region20
        $region19: #{tpu_custom_call.1} parent=11 // pred_region
          _
        $region20: #{tpu_custom_call.1} parent=11 // pred_fallthru
          _
        // Predicated region
        $region21: #{tpu_custom_call.1} parent=11 // pred_check
          %p167 = pneg %p104
        $region22: #{tpu_custom_call.1} parent=11 // pred_check_branch
          %169 = sbr.rel (%p167) target = $region24
        $region23: #{tpu_custom_call.1} parent=11 // pred_region
          _
        $region24: #{tpu_custom_call.1} parent=11 // pred_fallthru
          _
        // Predicated region
        $region25: #{tpu_custom_call.1} parent=11 // pred_check
          %p170 = pneg %p125
        $region26: #{tpu_custom_call.1} parent=11 // pred_check_branch
          %172 = sbr.rel (%p170) target = $region28
        $region27: #{tpu_custom_call.1} parent=11 // pred_region
          _
        $region28: #{tpu_custom_call.1} parent=11 // pred_fallthru
          _
      $region12: #{tpu_custom_call.1} parent=5 // pred_fallthru
        _
      %p173 = scmp.lt.s32.totalorder %s15, 2
      // Predicated region
      $region29: #{tpu_custom_call.1} parent=5 // pred_check
        %p174 = pneg %p173
      $region30: #{tpu_custom_call.1} parent=5 // pred_check_branch
        %176 = sbr.rel (%p174) target = $region32
      $region31: #{tpu_custom_call.1} parent=5 // pred_region
        // Predicated region
        $region33: #{tpu_custom_call.1} parent=31 // pred_check
          %p177 = pneg %p35
        $region34: #{tpu_custom_call.1} parent=31 // pred_check_branch
          %179 = sbr.rel (%p177) target = $region36
        $region35: #{tpu_custom_call.1} parent=31 // pred_region
          %s180 = sand.u32 %s25, 1
          %s181 = scalar_lea.sflag [#allocation4], %s180
          %s182 = sand.u32 %s25, 1
          %s183 = smul.addr %s182, 8
          %s184 = scalar_lea.vmem [#allocation3], %s183
          %186 = vsyncadd %s181, 0
          %s187 = smul.addr %s15, 2
          %s188 = smul.addr %s187, 4
          %s189 = scalar_lea.hbm %s0, %s188
          %s191 = sshll.u32 %s189, 4
          %s192 = int_to_ptr.hbm [resolvable:$true] %s191
          %s193 = sshll.u32 %s184, 4
          %s194 = int_to_ptr.vmem [resolvable:$true] %s193
          %196 = dma.hbm_to_vmem [thread:$0]  %s192, 128, %s194, %s181
        $region36: #{tpu_custom_call.1} parent=31 // pred_fallthru
          _
      $region32: #{tpu_custom_call.1} parent=5 // pred_fallthru
        _
      %p197 = scmp.le.s32.totalorder 1, %s15
      %p198 = scmp.lt.s32.totalorder %s15, 3
      %p199 = pnand %p197, %p198
      %p200 = pneg %p199
      // Predicated region
      $region37: #{tpu_custom_call.1} parent=5 // pred_check
        _
      $region38: #{tpu_custom_call.1} parent=5 // pred_check_branch
        %202 = sbr.rel (%p199) target = $region40
      $region39: #{tpu_custom_call.1} parent=5 // pred_region
        %s203 = ssub.s32 %s15, 1
        %s204 = sand.u32 %s28, 1
        %s205 = scalar_lea.sflag [#allocation4], %s204
        %s206 = sand.u32 %s28, 1
        %s207 = smul.addr %s206, 8
        %s208 = scalar_lea.vmem [#allocation3], %s207
        // Predicated region
        $region41: #{tpu_custom_call.1} parent=39 // pred_check
          %p209 = pneg %p41
        $region42: #{tpu_custom_call.1} parent=39 // pred_check_branch
          %211 = sbr.rel (%p209) target = $region44
        $region43: #{tpu_custom_call.1} parent=39 // pred_region
          %213 = dma.done %s205, 128
        $region44: #{tpu_custom_call.1} parent=39 // pred_fallthru
          _
        %s214 = sand.u32 %s28, 1
        %s215 = scalar_lea.sflag [#allocation4], %s214
        %s216 = sand.u32 %s28, 1
        %s217 = smul.addr %s216, 8
        %s218 = scalar_lea.vmem [#allocation3], %s217
        %p219 = pneg %p41
        %p220 = pneg %p38
        %p221 = pneg %p62
        %p222 = pneg %p59
        %p223 = pneg %p83
        %p224 = pneg %p80
        %p225 = pneg %p104
        %p226 = pneg %p101
        %p227 = pneg %p125
        %p228 = pneg %p122
        %p229 = pneg %p146
        %p230 = pneg %p143
        %v231 = vld [vmem:[%s208] sm:$0xff]
        %233 = vst [vmem:[#allocation1] ss:$2 sm:$0xff] %v231
        %v234 = vld.sshfl [vmem:[#allocation1] sm:$0xff pattern:$0x75316420]
        %v235 = vld.sshfl [vmem:[#allocation1 + $0x8] sm:$0xff pattern:$0x75316420]
        %vm238 = vcmask 1043456
        %v239 = vsel %vm238, %v234, 0.0
        %v240 = vsel %vm238, %v235, 0.0
        %v241 = vadd.f32 %v239, %v240
        %242 = vadd.xlane.f32.xlu0 %v241
        %v243 = vpop.xlane.xlu0 %242
        %v244 = vrcp.pop 256.0
        %v245 = vmul.f32 256.0, %v244
        %v246 = vsub.f32 1.0, %v245
        %v247 = vmul.f32 %v244, %v246
        %v248 = vadd.f32 %v244, %v247
        %vm249 = vweird.f32 %v244
        %v250 = vsel %vm249, %v244, %v248
        %v251 = vmul.f32 %v243, %v250
        %v253 = vlaneseq
        %v254 = vand.u32 %v253, 127
        %v255 = vperm.slane %v251, %v254
        %s257 = scalar_lea.vmem [#allocation2], %s20
        %vm258 = vcmask 24576
        %259 = vst.msk [vmem:[%s257] sm:$0x1] %vm258, %v255
        %p260 = scmp.eq.s32.totalorder %s20, 1
        // Predicated region
        $region45: #{tpu_custom_call.1} parent=39 // pred_check
          %p261 = pneg %p260
        $region46: #{tpu_custom_call.1} parent=39 // pred_check_branch
          %263 = sbr.rel (%p261) target = $region48
        $region47: #{tpu_custom_call.1} parent=39 // pred_region
          %v264 = vld [vmem:[#allocation2] sm:$0x3]
          %v265 = vld [vmem:[%s1] sm:$0xf]
          %v266 = vld [vmem:[%s2] sm:$0x1]
          %v268 = vperm.slane %v266, 0
          %vm270 = vcmask 31744
          %v272 = vsel %vm270, %v264, 0
          %v275 = vsel %vm238, %v265, 0
          %277 = vmatpush.msra.mxu0 0.0
          %278 = vmatpush.msra.mxu0 0.0
          %279 = vmatpush.msra.mxu0 0.0
          %280 = vmatpush.msra.mxu0 0.0
          %281 = vmatpush.msra.mxu0 0.0
          %282 = vmatpush.msra.mxu0 0.0
          %283 = vmatpush.msra.mxu0 0.0
          %284 = vmatpush.msra.mxu0 0.0
          %285 = vmatpush.msra.mxu0 0.0
          %286 = vmatpush.msra.mxu0 0.0
          %287 = vmatpush.msra.mxu0 0.0
          %288 = vmatpush.msra.mxu0 0.0
          %289 = vmatpush.msra.mxu0 0.0
          %290 = vmatpush.msra.mxu0 0.0
          %291 = vmatpush.msra.mxu0 0.0
          %v292 = vand.u32 %v275, 4294901760
          %293 = vmatpush.msra.mxu0 %v292
          %v294 = vand.u32 %v272, 4294901760
          %v295 = vsub.f32 %v272, %v294
          %v296 = vand.u32 %v295, 4294901760
          %v297 = vsub.f32 %v295, %v296
          %v298 = vand.u32 %v297, 4294901760
          %299 = vmatmul.f32.gmra.mxu0 %v298
          %v300 = vpop.f32.mrf.mxu0
          %v301 = vadd.f32 %v268, %v300
          %302 = vdwg.mxu0
          %303 = vmatpush.msra.mxu0 0.0
          %304 = vmatpush.msra.mxu0 0.0
          %305 = vmatpush.msra.mxu0 0.0
          %306 = vmatpush.msra.mxu0 0.0
          %307 = vmatpush.msra.mxu0 0.0
          %308 = vmatpush.msra.mxu0 0.0
          %309 = vmatpush.msra.mxu0 0.0
          %310 = vmatpush.msra.mxu0 0.0
          %311 = vmatpush.msra.mxu0 0.0
          %312 = vmatpush.msra.mxu0 0.0
          %313 = vmatpush.msra.mxu0 0.0
          %314 = vmatpush.msra.mxu0 0.0
          %315 = vmatpush.msra.mxu0 0.0
          %316 = vmatpush.msra.mxu0 0.0
          %317 = vmatpush.msra.mxu0 0.0
          %v318 = vand.u32 %v275, 4294901760
          %v319 = vsub.f32 %v275, %v318
          %v320 = vand.u32 %v319, 4294901760
          %v321 = vsub.f32 %v319, %v320
          %v322 = vand.u32 %v321, 4294901760
          %323 = vmatpush.msra.mxu0 %v322
          %v324 = vand.u32 %v272, 4294901760
          %325 = vmatmul.f32.gmra.mxu0 %v324
          %v326 = vpop.f32.mrf.mxu0
          %v327 = vadd.f32 %v301, %v326
          %328 = vdwg.mxu0
          %329 = vmatpush.msra.mxu0 0.0
          %330 = vmatpush.msra.mxu0 0.0
          %331 = vmatpush.msra.mxu0 0.0
          %332 = vmatpush.msra.mxu0 0.0
          %333 = vmatpush.msra.mxu0 0.0
          %334 = vmatpush.msra.mxu0 0.0
          %335 = vmatpush.msra.mxu0 0.0
          %336 = vmatpush.msra.mxu0 0.0
          %337 = vmatpush.msra.mxu0 0.0
          %338 = vmatpush.msra.mxu0 0.0
          %339 = vmatpush.msra.mxu0 0.0
          %340 = vmatpush.msra.mxu0 0.0
          %341 = vmatpush.msra.mxu0 0.0
          %342 = vmatpush.msra.mxu0 0.0
          %343 = vmatpush.msra.mxu0 0.0
          %v344 = vand.u32 %v275, 4294901760
          %v345 = vsub.f32 %v275, %v344
          %346 = vmatpush.msra.mxu0 %v345
          %v347 = vand.u32 %v272, 4294901760
          %v348 = vsub.f32 %v272, %v347
          %349 = vmatmul.f32.gmra.mxu0 %v348
          %v350 = vpop.f32.mrf.mxu0
          %v351 = vadd.f32 %v327, %v350
          %352 = vdwg.mxu0
          %353 = vmatpush.msra.mxu0 0.0
          %354 = vmatpush.msra.mxu0 0.0
          %355 = vmatpush.msra.mxu0 0.0
          %356 = vmatpush.msra.mxu0 0.0
          %357 = vmatpush.msra.mxu0 0.0
          %358 = vmatpush.msra.mxu0 0.0
          %359 = vmatpush.msra.mxu0 0.0
          %360 = vmatpush.msra.mxu0 0.0
          %361 = vmatpush.msra.mxu0 0.0
          %362 = vmatpush.msra.mxu0 0.0
          %363 = vmatpush.msra.mxu0 0.0
          %364 = vmatpush.msra.mxu0 0.0
          %365 = vmatpush.msra.mxu0 0.0
          %366 = vmatpush.msra.mxu0 0.0
          %367 = vmatpush.msra.mxu0 0.0
          %v368 = vand.u32 %v275, 4294901760
          %369 = vmatpush.msra.mxu0 %v368
          %v370 = vand.u32 %v272, 4294901760
          %v371 = vsub.f32 %v272, %v370
          %v372 = vand.u32 %v371, 4294901760
          %373 = vmatmul.f32.gmra.mxu0 %v372
          %v374 = vpop.f32.mrf.mxu0
          %v375 = vadd.f32 %v351, %v374
          %376 = vdwg.mxu0
          %377 = vmatpush.msra.mxu0 0.0
          %378 = vmatpush.msra.mxu0 0.0
          %379 = vmatpush.msra.mxu0 0.0
          %380 = vmatpush.msra.mxu0 0.0
          %381 = vmatpush.msra.mxu0 0.0
          %382 = vmatpush.msra.mxu0 0.0
          %383 = vmatpush.msra.mxu0 0.0
          %384 = vmatpush.msra.mxu0 0.0
          %385 = vmatpush.msra.mxu0 0.0
          %386 = vmatpush.msra.mxu0 0.0
          %387 = vmatpush.msra.mxu0 0.0
          %388 = vmatpush.msra.mxu0 0.0
          %389 = vmatpush.msra.mxu0 0.0
          %390 = vmatpush.msra.mxu0 0.0
          %391 = vmatpush.msra.mxu0 0.0
          %v392 = vand.u32 %v275, 4294901760
          %v393 = vsub.f32 %v275, %v392
          %v394 = vand.u32 %v393, 4294901760
          %395 = vmatpush.msra.mxu0 %v394
          %v396 = vand.u32 %v272, 4294901760
          %397 = vmatmul.f32.gmra.mxu0 %v396
          %v398 = vpop.f32.mrf.mxu0
          %v399 = vadd.f32 %v375, %v398
          %400 = vdwg.mxu0
          %401 = vmatpush.msra.mxu0 0.0
          %402 = vmatpush.msra.mxu0 0.0
          %403 = vmatpush.msra.mxu0 0.0
          %404 = vmatpush.msra.mxu0 0.0
          %405 = vmatpush.msra.mxu0 0.0
          %406 = vmatpush.msra.mxu0 0.0
          %407 = vmatpush.msra.mxu0 0.0
          %408 = vmatpush.msra.mxu0 0.0
          %409 = vmatpush.msra.mxu0 0.0
          %410 = vmatpush.msra.mxu0 0.0
          %411 = vmatpush.msra.mxu0 0.0
          %412 = vmatpush.msra.mxu0 0.0
          %413 = vmatpush.msra.mxu0 0.0
          %414 = vmatpush.msra.mxu0 0.0
          %415 = vmatpush.msra.mxu0 0.0
          %v416 = vand.u32 %v275, 4294901760
          %417 = vmatpush.msra.mxu0 %v416
          %v418 = vand.u32 %v272, 4294901760
          %419 = vmatmul.f32.gmra.mxu0 %v418
          %v420 = vpop.f32.mrf.mxu0
          %v421 = vadd.f32 %v399, %v420
          %422 = vdwg.mxu0
          %v423 = vmax.f32 %v421, 0.0
          %v424 = vld [vmem:[%s3] sm:$0xff]
          %v425 = vld [vmem:[%s4] sm:$0x1]
          %v427 = vperm.slane %v425, 0
          %vm429 = vcmask 64512
          %v431 = vsel %vm429, %v423, 0
          %433 = vmatpush.msra.mxu0 0.0
          %434 = vmatpush.msra.mxu0 0.0
          %435 = vmatpush.msra.mxu0 0.0
          %436 = vmatpush.msra.mxu0 0.0
          %437 = vmatpush.msra.mxu0 0.0
          %438 = vmatpush.msra.mxu0 0.0
          %439 = vmatpush.msra.mxu0 0.0
          %440 = vmatpush.msra.mxu0 0.0
          %441 = vmatpush.msra.mxu0 0.0
          %442 = vmatpush.msra.mxu0 0.0
          %443 = vmatpush.msra.mxu0 0.0
          %444 = vmatpush.msra.mxu0 0.0
          %445 = vmatpush.msra.mxu0 0.0
          %446 = vmatpush.msra.mxu0 0.0
          %447 = vmatpush.msra.mxu0 0.0
          %v448 = vand.u32 %v424, 4294901760
          %449 = vmatpush.msra.mxu0 %v448
          %v450 = vand.u32 %v431, 4294901760
          %v451 = vsub.f32 %v431, %v450
          %v452 = vand.u32 %v451, 4294901760
          %v453 = vsub.f32 %v451, %v452
          %v454 = vand.u32 %v453, 4294901760
          %455 = vmatmul.f32.gmra.mxu0 %v454
          %v456 = vpop.f32.mrf.mxu0
          %v457 = vadd.f32 %v427, %v456
          %458 = vdwg.mxu0
          %459 = vmatpush.msra.mxu0 0.0
          %460 = vmatpush.msra.mxu0 0.0
          %461 = vmatpush.msra.mxu0 0.0
          %462 = vmatpush.msra.mxu0 0.0
          %463 = vmatpush.msra.mxu0 0.0
          %464 = vmatpush.msra.mxu0 0.0
          %465 = vmatpush.msra.mxu0 0.0
          %466 = vmatpush.msra.mxu0 0.0
          %467 = vmatpush.msra.mxu0 0.0
          %468 = vmatpush.msra.mxu0 0.0
          %469 = vmatpush.msra.mxu0 0.0
          %470 = vmatpush.msra.mxu0 0.0
          %471 = vmatpush.msra.mxu0 0.0
          %472 = vmatpush.msra.mxu0 0.0
          %473 = vmatpush.msra.mxu0 0.0
          %v474 = vand.u32 %v424, 4294901760
          %v475 = vsub.f32 %v424, %v474
          %v476 = vand.u32 %v475, 4294901760
          %v477 = vsub.f32 %v475, %v476
          %v478 = vand.u32 %v477, 4294901760
          %479 = vmatpush.msra.mxu0 %v478
          %v480 = vand.u32 %v431, 4294901760
          %481 = vmatmul.f32.gmra.mxu0 %v480
          %v482 = vpop.f32.mrf.mxu0
          %v483 = vadd.f32 %v457, %v482
          %484 = vdwg.mxu0
          %485 = vmatpush.msra.mxu0 0.0
          %486 = vmatpush.msra.mxu0 0.0
          %487 = vmatpush.msra.mxu0 0.0
          %488 = vmatpush.msra.mxu0 0.0
          %489 = vmatpush.msra.mxu0 0.0
          %490 = vmatpush.msra.mxu0 0.0
          %491 = vmatpush.msra.mxu0 0.0
          %492 = vmatpush.msra.mxu0 0.0
          %493 = vmatpush.msra.mxu0 0.0
          %494 = vmatpush.msra.mxu0 0.0
          %495 = vmatpush.msra.mxu0 0.0
          %496 = vmatpush.msra.mxu0 0.0
          %497 = vmatpush.msra.mxu0 0.0
          %498 = vmatpush.msra.mxu0 0.0
          %499 = vmatpush.msra.mxu0 0.0
          %v500 = vand.u32 %v424, 4294901760
          %v501 = vsub.f32 %v424, %v500
          %502 = vmatpush.msra.mxu0 %v501
          %v503 = vand.u32 %v431, 4294901760
          %v504 = vsub.f32 %v431, %v503
          %505 = vmatmul.f32.gmra.mxu0 %v504
          %v506 = vpop.f32.mrf.mxu0
          %v507 = vadd.f32 %v483, %v506
          %508 = vdwg.mxu0
          %509 = vmatpush.msra.mxu0 0.0
          %510 = vmatpush.msra.mxu0 0.0
          %511 = vmatpush.msra.mxu0 0.0
          %512 = vmatpush.msra.mxu0 0.0
          %513 = vmatpush.msra.mxu0 0.0
          %514 = vmatpush.msra.mxu0 0.0
          %515 = vmatpush.msra.mxu0 0.0
          %516 = vmatpush.msra.mxu0 0.0
          %517 = vmatpush.msra.mxu0 0.0
          %518 = vmatpush.msra.mxu0 0.0
          %519 = vmatpush.msra.mxu0 0.0
          %520 = vmatpush.msra.mxu0 0.0
          %521 = vmatpush.msra.mxu0 0.0
          %522 = vmatpush.msra.mxu0 0.0
          %523 = vmatpush.msra.mxu0 0.0
          %v524 = vand.u32 %v424, 4294901760
          %525 = vmatpush.msra.mxu0 %v524
          %v526 = vand.u32 %v431, 4294901760
          %v527 = vsub.f32 %v431, %v526
          %v528 = vand.u32 %v527, 4294901760
          %529 = vmatmul.f32.gmra.mxu0 %v528
          %v530 = vpop.f32.mrf.mxu0
          %v531 = vadd.f32 %v507, %v530
          %532 = vdwg.mxu0
          %533 = vmatpush.msra.mxu0 0.0
          %534 = vmatpush.msra.mxu0 0.0
          %535 = vmatpush.msra.mxu0 0.0
          %536 = vmatpush.msra.mxu0 0.0
          %537 = vmatpush.msra.mxu0 0.0
          %538 = vmatpush.msra.mxu0 0.0
          %539 = vmatpush.msra.mxu0 0.0
          %540 = vmatpush.msra.mxu0 0.0
          %541 = vmatpush.msra.mxu0 0.0
          %542 = vmatpush.msra.mxu0 0.0
          %543 = vmatpush.msra.mxu0 0.0
          %544 = vmatpush.msra.mxu0 0.0
          %545 = vmatpush.msra.mxu0 0.0
          %546 = vmatpush.msra.mxu0 0.0
          %547 = vmatpush.msra.mxu0 0.0
          %v548 = vand.u32 %v424, 4294901760
          %v549 = vsub.f32 %v424, %v548
          %v550 = vand.u32 %v549, 4294901760
          %551 = vmatpush.msra.mxu0 %v550
          %v552 = vand.u32 %v431, 4294901760
          %553 = vmatmul.f32.gmra.mxu0 %v552
          %v554 = vpop.f32.mrf.mxu0
          %v555 = vadd.f32 %v531, %v554
          %556 = vdwg.mxu0
          %557 = vmatpush.msra.mxu0 0.0
          %558 = vmatpush.msra.mxu0 0.0
          %559 = vmatpush.msra.mxu0 0.0
          %560 = vmatpush.msra.mxu0 0.0
          %561 = vmatpush.msra.mxu0 0.0
          %562 = vmatpush.msra.mxu0 0.0
          %563 = vmatpush.msra.mxu0 0.0
          %564 = vmatpush.msra.mxu0 0.0
          %565 = vmatpush.msra.mxu0 0.0
          %566 = vmatpush.msra.mxu0 0.0
          %567 = vmatpush.msra.mxu0 0.0
          %568 = vmatpush.msra.mxu0 0.0
          %569 = vmatpush.msra.mxu0 0.0
          %570 = vmatpush.msra.mxu0 0.0
          %571 = vmatpush.msra.mxu0 0.0
          %v572 = vand.u32 %v424, 4294901760
          %573 = vmatpush.msra.mxu0 %v572
          %v574 = vand.u32 %v431, 4294901760
          %575 = vmatmul.f32.gmra.mxu0 %v574
          %v576 = vpop.f32.mrf.mxu0
          %v577 = vadd.f32 %v555, %v576
          %578 = vdwg.mxu0
          %v579 = vadd.f32 %v577, 3.0
          %v580 = vmax.f32 %v579, 0.0
          %v581 = vmin.f32 %v580, 6.0
          %v582 = vmul.f32 %v581, 0.16666667
          %vm583 = vcmask 25600
          %584 = vst.msk [vmem:[#allocation6] sm:$0x3] %vm583, %v582
        $region48: #{tpu_custom_call.1} parent=39 // pred_fallthru
          _
        // Predicated region
        $region49: #{tpu_custom_call.1} parent=39 // pred_check
          %p585 = pneg %p143
        $region50: #{tpu_custom_call.1} parent=39 // pred_check_branch
          %587 = sbr.rel (%p585) target = $region52
        $region51: #{tpu_custom_call.1} parent=39 // pred_region
          %589 = vsyncadd [#allocation5], 0
          %s591 = sshll.u32 [#allocation6], 4
          %s592 = int_to_ptr.vmem [resolvable:$true] %s591
          %s593 = sshll.u32 %s5, 4
          %s594 = int_to_ptr.hbm [resolvable:$true] %s593
          %596 = dma.vmem_to_hbm [thread:$0]  %s592, 32, %s594, [#allocation5]
        $region52: #{tpu_custom_call.1} parent=39 // pred_fallthru
          _
        // Predicated region
        $region53: #{tpu_custom_call.1} parent=39 // pred_check
          %p597 = pneg %p143
        $region54: #{tpu_custom_call.1} parent=39 // pred_check_branch
          %599 = sbr.rel (%p597) target = $region56
        $region55: #{tpu_custom_call.1} parent=39 // pred_region
          %601 = dma.done [#allocation5], 32
        $region56: #{tpu_custom_call.1} parent=39 // pred_fallthru
          _
      $region40: #{tpu_custom_call.1} parent=5 // pred_fallthru
        _
      %p602 = scmp.le.s32.totalorder 2, %s15
      // Predicated region
      $region57: #{tpu_custom_call.1} parent=5 // pred_check
        %p603 = pneg %p602
      $region58: #{tpu_custom_call.1} parent=5 // pred_check_branch
        %605 = sbr.rel (%p603) target = $region60
      $region59: #{tpu_custom_call.1} parent=5 // pred_region
        %s606 = ssub.s32 %s15, 2
      $region60: #{tpu_custom_call.1} parent=5 // pred_fallthru
        _
    $region6: #{tpu_custom_call.1} parent=1 // loop_footer
      %s19 = sadd.s32 1, %s15
    $region7: #{tpu_custom_call.1} parent=1 // loop_footer_branch
      %14 = sbr.rel target = $region3
    $region8: #{tpu_custom_call.1} parent=1 // loop_exit
      _
    %607 = vsyncpa [#allocation4], 1
    %s608 = scalar_lea.sflag [#allocation4], 1
    %609 = vsyncpa %s608, 1
    %610 = vsyncpa [#allocation5], 1
    %s611 = scalar_lea.sflag [#allocation5], 1
    %612 = vsyncpa %s611, 1

</llo_original>
